<compile_context>
chip_gen: v7x
topology: tpu7x:2x2x1
jax: 0.10.0
libtpu: 0.0.40
codegen_flags: <defaults>
</compile_context>

<pallas_src>
import functools
import math

import jax
import jax.numpy as jnp
import numpy as np
from jax import lax
from jax.experimental import pallas as pl
from jax.experimental.pallas import tpu as pltpu

BN_EPS = 1e-5


def _mish_fast(x):
    # mish(x) = x * tanh(softplus(x)); with t = e^x:
    #   tanh(log1p(t)) = t*(t+2) / (t*(t+2) + 2)   -> one transcendental/elem.
    t = jnp.exp(jnp.minimum(x, 20.0))
    n = t * (t + 2.0)
    y = x * (n / (n + 2.0))
    return jnp.where(x > 20.0, x, y)


def _mish_ref(x):
    sp = jnp.where(x > 20.0, x, jnp.log1p(jnp.exp(jnp.minimum(x, 20.0))))
    return x * jnp.tanh(sp)


# ----------------------------------------------------------------------------
# Fused kernel: folded-BN + Mish + 2x2 avg-pool (static matmul) + 1x1 conv.
# ----------------------------------------------------------------------------
def _transition_kernel(x_ref, scale_ref, bias_ref, pool_ref, w_ref, o_ref):
    # x_ref:     (Cin, 4*K)  flat NCHW pixels of 2*TH input rows (lane-dense)
    # scale/bias:(Cin, 1)    folded eval-mode BatchNorm
    # pool_ref:  (4*K, K)    static 2x2 avg-pool matrix (entries 0 / 0.25)
    # w_ref:     (Cout, Cin) 1x1 conv weight
    # o_ref:     (Cout, K)   TH pooled rows of output pixels
    h = _mish_fast(x_ref[...] * scale_ref[...] + bias_ref[...])
    hp = jnp.dot(h, pool_ref[...], preferred_element_type=jnp.float32)
    o_ref[...] = jnp.dot(w_ref[...], hp,
                         preferred_element_type=jnp.float32).astype(o_ref.dtype)


def _pool_matrix(th, w2):
    """Static (4*TH*W2, TH*W2) matrix: 2x2 average pool over flat NCHW pixels."""
    wp = 2 * w2
    p = np.zeros((2 * th * wp, th * w2), np.float32)
    t = np.arange(th)[:, None, None, None]
    c = np.arange(w2)[None, :, None, None]
    dy = np.arange(2)[None, None, :, None]
    dx = np.arange(2)[None, None, None, :]
    rows = ((2 * t + dy) * wp + 2 * c + dx).reshape(-1)
    cols = np.broadcast_to(t * w2 + c, (th, w2, 2, 2)).reshape(-1)
    p[rows, cols] = 0.25
    return p


def _pick_row_tile(h2, w2, cin, batch, *, step_in_bytes=1 << 20, k_cap=256):
    """Pooled output rows (TH) handled per grid step.

    K = TH*W2 is the pooled-pixel lane width of the output block (input block
    is 4*K lanes).  Keep K a multiple of 128 when the shape allows; otherwise
    fall back to the full spatial extent (block == array dims, always legal).
    K is sized from a per-step input-byte budget and capped so the pooling
    matmul (8*Cin*K^2 flops/step) stays well under the HBM roofline on v5e.
    """
    g = 128 // math.gcd(128, max(w2, 1))          # TH granule for K % 128 == 0
    if g > h2:
        return h2                                 # full-spatial fallback
    k_budget = max(1, min(k_cap, step_in_bytes // (16 * max(cin, 1))))
    th = (min(h2, max(g, k_budget // max(w2, 1))) // g) * g
    th = max(g, th)
    if batch == 1 and h2 >= 2 * g:
        # keep >= 2 row tiles so both v7x TensorCores get work
        th = min(th, max(g, (((h2 + 1) // 2) // g) * g))
    return min(th, h2)


def transition_forward(x_nchw, params, *, step_in_bytes=1 << 20):
    """x_nchw: (B, Cin, H, W) f32 -> (B, Cout, H//2, W//2) f32."""
    B, Cin, H, W = x_nchw.shape
    w_mat = params["conv_w"]                       # (Cout, Cin)
    Cout = w_mat.shape[0]
    H2, W2 = H // 2, W // 2
    assert H2 > 0 and W2 > 0

    # Fold eval-mode BatchNorm into per-channel scale/bias (tiny one-time op).
    # TODO(synk): training-mode BatchNorm (batch stats / momentum) not implemented.
    scale = (params["bn_g"] * lax.rsqrt(params["bn_v"] + BN_EPS)).reshape(Cin, 1)
    bias = params["bn_b"].reshape(Cin, 1) - params["bn_m"].reshape(Cin, 1) * scale

    # Native layout: drop odd trailing row/col (AvgPool2d floors), then a FREE
    # row-major reshape to (B, Cin, Hp*Wp).  No transposes anywhere.
    x = x_nchw
    if (H != 2 * H2) or (W != 2 * W2):
        x = x[:, :, :2 * H2, :2 * W2]
    x_flat = x.reshape(B, Cin, 4 * H2 * W2)

    th = _pick_row_tile(H2, W2, Cin, B, step_in_bytes=step_in_bytes)
    K = th * W2                                    # pooled output lanes / step
    pool = jnp.asarray(_pool_matrix(th, W2))       # (4K, K), static constant

    grid = (B, pl.cdiv(H2, th))

    # Double-buffered footprint estimate, capped for v7x's 64 MiB VMEM.
    vmem_bytes = 4 * (2 * Cin * 4 * K + 2 * Cout * K + 2 * Cout * Cin
                      + 2 * 4 * K * K + 4 * Cin)
    vmem_limit = int(min(48 * 2 ** 20, max(16 * 2 ** 20, 2 * vmem_bytes)))

    out_flat = pl.pallas_call(
        _transition_kernel,
        out_shape=jax.ShapeDtypeStruct((B, Cout, H2 * W2), jnp.float32),
        grid=grid,
        in_specs=[
            pl.BlockSpec((None, Cin, 4 * K), lambda b, i: (b, 0, i)),  # x (row-tiled)
            pl.BlockSpec((Cin, 1), lambda b, i: (0, 0)),               # BN scale
            pl.BlockSpec((Cin, 1), lambda b, i: (0, 0)),               # BN bias
            pl.BlockSpec((4 * K, K), lambda b, i: (0, 0)),             # pool matrix
            pl.BlockSpec((Cout, Cin), lambda b, i: (0, 0)),            # conv weight
        ],
        out_specs=pl.BlockSpec((None, Cout, K), lambda b, i: (b, 0, i)),
        compiler_params=pltpu.CompilerParams(
            dimension_semantics=("parallel", "parallel"),
            vmem_limit_bytes=vmem_limit),
    )(x_flat, scale, bias, pool, w_mat)

    return out_flat.reshape(B, Cout, H2, W2)       # free reshape (NCHW already)


# ----------------------------------------------------------------------------
# Pure-JAX reference (mirrors torch semantics) for the correctness check.
# ----------------------------------------------------------------------------
def transition_reference(x_nchw, params):
    g = params["bn_g"][None, :, None, None]
    b = params["bn_b"][None, :, None, None]
    m = params["bn_m"][None, :, None, None]
    v = params["bn_v"][None, :, None, None]
    h = (x_nchw - m) / jnp.sqrt(v + BN_EPS) * g + b
    h = _mish_ref(h)
    y = jnp.einsum("bchw,oc->bohw", h, params["conv_w"])
    B, Cout, H, W = y.shape
    H2, W2 = H // 2, W // 2
    y = y[:, :, :2 * H2, :2 * W2].reshape(B, Cout, H2, 2, W2, 2)
    return y.mean(axis=(3, 5))


def init_params(key, in_channels, out_channels):
    ks = jax.random.split(key, 5)
    return {
        "bn_g": jax.random.uniform(ks[0], (in_channels,), jnp.float32, 0.5, 1.5),
        "bn_b": jax.random.normal(ks[1], (in_channels,), jnp.float32) * 0.1,
        "bn_m": jax.random.normal(ks[2], (in_channels,), jnp.float32) * 0.1,
        "bn_v": jax.random.uniform(ks[3], (in_channels,), jnp.float32, 0.5, 1.5),
        # torch Conv2d weight (Cout, Cin, 1, 1) with the 1x1 taps squeezed.
        "conv_w": jax.random.normal(ks[4], (out_channels, in_channels),
                                    jnp.float32) * 0.1,
    }


if __name__ == "__main__":
    def check(B, Cin, Cout, H, W, kx, kp):
        x = jax.random.normal(kx, (B, Cin, H, W), jnp.float32)
        params = init_params(kp, Cin, Cout)
        fwd = jax.jit(functools.partial(transition_forward, params=params))
        out = jax.block_until_ready(fwd(x))
        ref = jax.block_until_ready(transition_reference(x, params))
        assert out.shape == (B, Cout, H // 2, W // 2), out.shape
        err = float(jnp.max(jnp.abs(out - ref)))
        assert jnp.allclose(out, ref, rtol=1e-4, atol=1e-4), err

    k1, k2, k3, k4 = jax.random.split(jax.random.PRNGKey(0), 4)
    # Small shape -> full-spatial block path, grid (2, 1): 2 parallel steps.
    check(2, 16, 8, 16, 16, k1, k2)
    # Larger spatial -> lane-aligned row-tile path, grid (2, 4), K = 256 lanes.
    check(2, 16, 8, 64, 64, k3, k4)
    print("KERNEL_OK")
</pallas_src>

<mosaic_0001>
module attributes {stable_mosaic.version = 11 : i64} {
  func.func @_transition_kernel(%arg0: i32, %arg1: i32, %arg2: memref<1x16x256xf32, #tpu.memory_space<vmem>>, %arg3: memref<16x1xf32, #tpu.memory_space<vmem>>, %arg4: memref<16x1xf32, #tpu.memory_space<vmem>>, %arg5: memref<256x64xf32, #tpu.memory_space<vmem>>, %arg6: memref<8x16xf32, #tpu.memory_space<vmem>>, %arg7: memref<1x8x64xf32, #tpu.memory_space<vmem>>) attributes {dimension_semantics = [#tpu.dimension_semantics<parallel>, #tpu.dimension_semantics<parallel>], iteration_bounds = array<i64: 2, 1>, scalar_prefetch = 0 : i64, scratch_operands = 0 : i64, tpu.core_type = #tpu.core_type<tc>, window_params = [{transform_indices = @transform_0, window_bounds = array<i64: 1, 16, 256>}, {pipeline_mode = #tpu.pipeline_mode<synchronous>, transform_indices = @transform_1, window_bounds = array<i64: 16, 1>}, {pipeline_mode = #tpu.pipeline_mode<synchronous>, transform_indices = @transform_2, window_bounds = array<i64: 16, 1>}, {pipeline_mode = #tpu.pipeline_mode<synchronous>, transform_indices = @transform_3, window_bounds = array<i64: 256, 64>}, {pipeline_mode = #tpu.pipeline_mode<synchronous>, transform_indices = @transform_4, window_bounds = array<i64: 8, 16>}, {transform_indices = @transform_5, window_bounds = array<i64: 1, 8, 64>}]} {
    %c0 = arith.constant 0 : index
    %c0_0 = arith.constant 0 : index
    %c0_1 = arith.constant 0 : index
    %0 = vector.load %arg2[%c0, %c0_0, %c0_1] : memref<1x16x256xf32, #tpu.memory_space<vmem>>, vector<1x16x256xf32>
    %1 = vector.shape_cast %0 : vector<1x16x256xf32> to vector<16x256xf32>
    %c0_2 = arith.constant 0 : index
    %c0_3 = arith.constant 0 : index
    %2 = vector.load %arg3[%c0_2, %c0_3] : memref<16x1xf32, #tpu.memory_space<vmem>>, vector<16x1xf32>
    %3 = vector.broadcast %2 : vector<16x1xf32> to vector<16x256xf32>
    %4 = arith.mulf %1, %3 : vector<16x256xf32>
    %c0_4 = arith.constant 0 : index
    %c0_5 = arith.constant 0 : index
    %5 = vector.load %arg4[%c0_4, %c0_5] : memref<16x1xf32, #tpu.memory_space<vmem>>, vector<16x1xf32>
    %6 = vector.broadcast %5 : vector<16x1xf32> to vector<16x256xf32>
    %7 = arith.addf %4, %6 : vector<16x256xf32>
    %cst = arith.constant 2.000000e+01 : f32
    %8 = vector.broadcast %cst : f32 to vector<16x256xf32>
    %9 = arith.minimumf %7, %8 : vector<16x256xf32>
    %10 = math.exp %9 : vector<16x256xf32>
    %cst_6 = arith.constant 2.000000e+00 : f32
    %11 = vector.broadcast %cst_6 : f32 to vector<16x256xf32>
    %12 = arith.addf %10, %11 : vector<16x256xf32>
    %13 = arith.mulf %10, %12 : vector<16x256xf32>
    %cst_7 = arith.constant 2.000000e+00 : f32
    %14 = vector.broadcast %cst_7 : f32 to vector<16x256xf32>
    %15 = arith.addf %13, %14 : vector<16x256xf32>
    %16 = arith.divf %13, %15 : vector<16x256xf32>
    %17 = arith.mulf %7, %16 : vector<16x256xf32>
    %cst_8 = arith.constant 2.000000e+01 : f32
    %18 = vector.broadcast %cst_8 : f32 to vector<16x256xf32>
    %19 = arith.cmpf ogt, %7, %18 : vector<16x256xf32>
    %20 = arith.select %19, %7, %17 : vector<16x256xi1>, vector<16x256xf32>
    %c0_9 = arith.constant 0 : index
    %c0_10 = arith.constant 0 : index
    %21 = vector.load %arg5[%c0_9, %c0_10] : memref<256x64xf32, #tpu.memory_space<vmem>>, vector<256x64xf32>
    %cst_11 = arith.constant dense<0.000000e+00> : vector<16x64xf32>
    %22 = tpu.matmul %20, %21, %cst_11 {dimension_numbers = #tpu.dot_dimension_numbers<[1], [0], [0], [1], [0, 0, 1, 1], [], []>} : vector<16x256xf32>, vector<256x64xf32>, vector<16x64xf32> -> vector<16x64xf32>
    %c0_12 = arith.constant 0 : index
    %c0_13 = arith.constant 0 : index
    %23 = vector.load %arg6[%c0_12, %c0_13] : memref<8x16xf32, #tpu.memory_space<vmem>>, vector<8x16xf32>
    %cst_14 = arith.constant dense<0.000000e+00> : vector<8x64xf32>
    %24 = tpu.matmul %23, %22, %cst_14 {dimension_numbers = #tpu.dot_dimension_numbers<[1], [0], [0], [1], [0, 0, 1, 1], [], []>} : vector<8x16xf32>, vector<16x64xf32>, vector<8x64xf32> -> vector<8x64xf32>
    %c0_15 = arith.constant 0 : index
    %c0_16 = arith.constant 0 : index
    %c0_17 = arith.constant 0 : index
    %25 = vector.load %arg7[%c0_15, %c0_16, %c0_17] : memref<1x8x64xf32, #tpu.memory_space<vmem>>, vector<1x8x64xf32>
    %26 = vector.shape_cast %25 : vector<1x8x64xf32> to vector<8x64xf32>
    %27 = vector.shape_cast %24 : vector<8x64xf32> to vector<1x8x64xf32>
    tpu.vector_store %arg7[%c0_15, %c0_16, %c0_17], %27 {strides = array<i32>} : memref<1x8x64xf32, #tpu.memory_space<vmem>>, vector<1x8x64xf32>,
    return
  }
  func.func @transform_0(%arg0: i32, %arg1: i32) -> (i32, i32, i32) {
    %c0_i32 = arith.constant 0 : i32
    %c0_i32_0 = arith.constant 0 : i32
    return %arg0, %c0_i32, %arg1 : i32, i32, i32
  }
  func.func @transform_1(%arg0: i32, %arg1: i32) -> (i32, i32) {
    %c0_i32 = arith.constant 0 : i32
    %c0_i32_0 = arith.constant 0 : i32
    %c0_i32_1 = arith.constant 0 : i32
    return %c0_i32, %c0_i32_0 : i32, i32
  }
  func.func @transform_2(%arg0: i32, %arg1: i32) -> (i32, i32) {
    %c0_i32 = arith.constant 0 : i32
    %c0_i32_0 = arith.constant 0 : i32
    %c0_i32_1 = arith.constant 0 : i32
    return %c0_i32, %c0_i32_0 : i32, i32
  }
  func.func @transform_3(%arg0: i32, %arg1: i32) -> (i32, i32) {
    %c0_i32 = arith.constant 0 : i32
    %c0_i32_0 = arith.constant 0 : i32
    %c0_i32_1 = arith.constant 0 : i32
    return %c0_i32, %c0_i32_0 : i32, i32
  }
  func.func @transform_4(%arg0: i32, %arg1: i32) -> (i32, i32) {
    %c0_i32 = arith.constant 0 : i32
    %c0_i32_0 = arith.constant 0 : i32
    %c0_i32_1 = arith.constant 0 : i32
    return %c0_i32, %c0_i32_0 : i32, i32
  }
  func.func @transform_5(%arg0: i32, %arg1: i32) -> (i32, i32, i32) {
    %c0_i32 = arith.constant 0 : i32
    %c0_i32_0 = arith.constant 0 : i32
    return %arg0, %c0_i32, %arg1 : i32, i32, i32
  }
}

</mosaic_0001>

<llo_original>
// kernel: transition_forward.1
$region0: #{transition_forward.1}
  #allocation0 [shape = 'u32[]', space=smem, size = 0x4, offset = 0x4, fixed_abs, tag = 'smem constant byte address 0x4 - core index']
  #allocation1 [shape = 'u32[144,128]{1,0:T(1,128)}', space=vmem, size = 0x12000, scoped, tag = 'internal scratch']
  %s0 = inlined_call_operand.vmem [shape: f32[2,16,256], index: 0, kind: input, shape index: {}]
  %s1 = inlined_call_operand.vmem [shape: f32[16,1], index: 1, kind: input, shape index: {}]
  %s2 = inlined_call_operand.vmem [shape: f32[16,1], index: 2, kind: input, shape index: {}]
  %s3 = inlined_call_operand.vmem [shape: f32[256,64], index: 3, kind: input, shape index: {}]
  %s4 = inlined_call_operand.vmem [shape: f32[8,16], index: 4, kind: input, shape index: {}]
  %s5 = inlined_call_operand.vmem [shape: f32[2,8,64], index: 5, kind: output, shape index: {}]
  %s6 = sld [smem:[#allocation0]]
  $region53: #{transition_forward.1} parent=0
    _
  %s8 = ssub.s32 1, %s6
  %s9 = scalar_select 0, %s8, %s6
  loop: start=0, step=1, limit=4
  $region2: #{transition_forward.1} parent=0 // loop_pre_header
    _
  $region3: #{transition_forward.1} parent=0 // loop_header
    %s11 = sphi 0, %s15
    %p12 = scmp.ge.s32.totalorder %s11, 4
    %s18 = sphi 0, %s30
    %s19 = sphi 0, %s26
    %s20 = sphi 0, %s18
    %s21 = sphi 0, %s19
    %s22 = sphi 0, %s20
    %s23 = sphi 0, %s21
    %s35 = sphi 0, %s37
    %s38 = sphi 0, %s35
    %s39 = sphi 0, %s38
    %s55 = sphi 0, %s39
    %s59 = sphi 0, %s59
    %s61 = sphi 0, %s59
    %s62 = sphi 0, %s61
    %s76 = sphi 0, %s62
    %s80 = sphi 0, %s80
    %s82 = sphi 0, %s80
    %s83 = sphi 0, %s82
    %s97 = sphi 0, %s83
    %s101 = sphi 0, %s101
    %s103 = sphi 0, %s101
    %s104 = sphi 0, %s103
    %s118 = sphi 0, %s104
    %s122 = sphi 0, %s122
    %s124 = sphi 0, %s122
    %s125 = sphi 0, %s124
    %s139 = sphi 0, %s125
    %s147 = sphi 0, %s149
    %s150 = sphi 0, %s147
    %s151 = sphi 0, %s150
    %s167 = sphi 0, %s151
  $region4: #{transition_forward.1} parent=0 // loop_header_branch
    %14 = sbr.rel (%p12) target = $region8
  $region5: #{transition_forward.1} parent=0 // loop_body
    %s16 = ssub.s32 %s11, 1
    %s17 = ssub.s32 %s11, 2
    %s24 = sadd.s32 1, %s19
    %p25 = scmp.ge.s32.totalorder %s24, 1
    %s26 = scalar_select %p25, 0, %s24
    %s27 = sadd.s32 1, %s18
    %s28 = scalar_select %p25, %s27, %s18
    %p29 = scmp.ge.s32.totalorder %s28, 2
    %s30 = scalar_select %p29, 0, %s28
    %s31 = ssub.s32 %s18, %s30
    %s32 = ssub.s32 %s19, %s26
    %s33 = sor.u32 %s31, %s32
    %p34 = scmp.eq.s32.totalorder %s33, 0
    %s36 = sadd.s32 %s35, 1
    %s37 = scalar_select %p34, %s35, %s36
    %p40 = pneg %p34
    %p41 = scmp.eq.s32.totalorder %s11, 1
    %p42 = por %p40, %p41
    %p43 = scmp.ne.s32.totalorder %s35, %s38
    %p44 = scmp.eq.s32.totalorder %s11, 0
    %p45 = por %p43, %p44
    %p46 = scmp.ne.s32.totalorder %s35, %s38
    %p47 = scmp.eq.s32.totalorder %s16, 1
    %p48 = por %p46, %p47
    %p49 = scmp.ne.s32.totalorder %s38, %s39
    %p50 = scmp.eq.s32.totalorder %s16, 0
    %p51 = por %p49, %p50
    %p52 = scmp.ne.s32.totalorder %s38, %s39
    %p53 = scmp.eq.s32.totalorder %s17, 1
    %p54 = por %p52, %p53
    %p56 = scmp.ne.s32.totalorder %s39, %s55
    %p57 = scmp.eq.s32.totalorder %s17, 0
    %p58 = por %p56, %p57
    %s60 = sadd.s32 %s59, 1
    %p63 = scmp.eq.s32.totalorder %s11, 1
    %p64 = scmp.ne.s32.totalorder %s59, %s61
    %p65 = scmp.eq.s32.totalorder %s11, 0
    %p66 = por %p64, %p65
    %p67 = scmp.ne.s32.totalorder %s59, %s61
    %p68 = scmp.eq.s32.totalorder %s16, 1
    %p69 = por %p67, %p68
    %p70 = scmp.ne.s32.totalorder %s61, %s62
    %p71 = scmp.eq.s32.totalorder %s16, 0
    %p72 = por %p70, %p71
    %p73 = scmp.ne.s32.totalorder %s61, %s62
    %p74 = scmp.eq.s32.totalorder %s17, 1
    %p75 = por %p73, %p74
    %p77 = scmp.ne.s32.totalorder %s62, %s76
    %p78 = scmp.eq.s32.totalorder %s17, 0
    %p79 = por %p77, %p78
    %s81 = sadd.s32 %s80, 1
    %p84 = scmp.eq.s32.totalorder %s11, 1
    %p85 = scmp.ne.s32.totalorder %s80, %s82
    %p86 = scmp.eq.s32.totalorder %s11, 0
    %p87 = por %p85, %p86
    %p88 = scmp.ne.s32.totalorder %s80, %s82
    %p89 = scmp.eq.s32.totalorder %s16, 1
    %p90 = por %p88, %p89
    %p91 = scmp.ne.s32.totalorder %s82, %s83
    %p92 = scmp.eq.s32.totalorder %s16, 0
    %p93 = por %p91, %p92
    %p94 = scmp.ne.s32.totalorder %s82, %s83
    %p95 = scmp.eq.s32.totalorder %s17, 1
    %p96 = por %p94, %p95
    %p98 = scmp.ne.s32.totalorder %s83, %s97
    %p99 = scmp.eq.s32.totalorder %s17, 0
    %p100 = por %p98, %p99
    %s102 = sadd.s32 %s101, 1
    %p105 = scmp.eq.s32.totalorder %s11, 1
    %p106 = scmp.ne.s32.totalorder %s101, %s103
    %p107 = scmp.eq.s32.totalorder %s11, 0
    %p108 = por %p106, %p107
    %p109 = scmp.ne.s32.totalorder %s101, %s103
    %p110 = scmp.eq.s32.totalorder %s16, 1
    %p111 = por %p109, %p110
    %p112 = scmp.ne.s32.totalorder %s103, %s104
    %p113 = scmp.eq.s32.totalorder %s16, 0
    %p114 = por %p112, %p113
    %p115 = scmp.ne.s32.totalorder %s103, %s104
    %p116 = scmp.eq.s32.totalorder %s17, 1
    %p117 = por %p115, %p116
    %p119 = scmp.ne.s32.totalorder %s104, %s118
    %p120 = scmp.eq.s32.totalorder %s17, 0
    %p121 = por %p119, %p120
    %s123 = sadd.s32 %s122, 1
    %p126 = scmp.eq.s32.totalorder %s11, 1
    %p127 = scmp.ne.s32.totalorder %s122, %s124
    %p128 = scmp.eq.s32.totalorder %s11, 0
    %p129 = por %p127, %p128
    %p130 = scmp.ne.s32.totalorder %s122, %s124
    %p131 = scmp.eq.s32.totalorder %s16, 1
    %p132 = por %p130, %p131
    %p133 = scmp.ne.s32.totalorder %s124, %s125
    %p134 = scmp.eq.s32.totalorder %s16, 0
    %p135 = por %p133, %p134
    %p136 = scmp.ne.s32.totalorder %s124, %s125
    %p137 = scmp.eq.s32.totalorder %s17, 1
    %p138 = por %p136, %p137
    %p140 = scmp.ne.s32.totalorder %s125, %s139
    %p141 = scmp.eq.s32.totalorder %s17, 0
    %p142 = por %p140, %p141
    %s143 = ssub.s32 %s18, %s30
    %s144 = ssub.s32 %s19, %s26
    %s145 = sor.u32 %s143, %s144
    %p146 = scmp.eq.s32.totalorder %s145, 0
    %s148 = sadd.s32 %s147, 1
    %s149 = scalar_select %p146, %s147, %s148
    %p152 = pneg %p146
    %p153 = scmp.eq.s32.totalorder %s11, 1
    %p154 = por %p152, %p153
    %p155 = scmp.ne.s32.totalorder %s147, %s150
    %p156 = scmp.eq.s32.totalorder %s11, 0
    %p157 = por %p155, %p156
    %p158 = scmp.ne.s32.totalorder %s147, %s150
    %p159 = scmp.eq.s32.totalorder %s16, 1
    %p160 = por %p158, %p159
    %p161 = scmp.ne.s32.totalorder %s150, %s151
    %p162 = scmp.eq.s32.totalorder %s16, 0
    %p163 = por %p161, %p162
    %p164 = scmp.ne.s32.totalorder %s150, %s151
    %p165 = scmp.eq.s32.totalorder %s17, 1
    %p166 = por %p164, %p165
    %p168 = scmp.ne.s32.totalorder %s151, %s167
    %p169 = scmp.eq.s32.totalorder %s17, 0
    %p170 = por %p168, %p169
    %p171 = scmp.le.s32.totalorder 1, %s11
    %p172 = scmp.lt.s32.totalorder %s11, 3
    %p173 = pnand %p171, %p172
    %p174 = pneg %p173
    // Predicated region
    $region9: #{transition_forward.1} parent=5 // pred_check
      _
    $region10: #{transition_forward.1} parent=5 // pred_check_branch
      %176 = sbr.rel (%p173) target = $region12
    $region11: #{transition_forward.1} parent=5 // pred_region
      %s177 = ssub.s32 %s11, 1
      // Predicated region
      $region13: #{transition_forward.1} parent=11 // pred_check
        %p178 = pneg %p72
      $region14: #{transition_forward.1} parent=11 // pred_check_branch
        %180 = sbr.rel (%p178) target = $region16
      $region15: #{transition_forward.1} parent=11 // pred_region
        _
      $region16: #{transition_forward.1} parent=11 // pred_fallthru
        _
      // Predicated region
      $region17: #{transition_forward.1} parent=11 // pred_check
        %p181 = pneg %p93
      $region18: #{transition_forward.1} parent=11 // pred_check_branch
        %183 = sbr.rel (%p181) target = $region20
      $region19: #{transition_forward.1} parent=11 // pred_region
        _
      $region20: #{transition_forward.1} parent=11 // pred_fallthru
        _
      // Predicated region
      $region21: #{transition_forward.1} parent=11 // pred_check
        %p184 = pneg %p114
      $region22: #{transition_forward.1} parent=11 // pred_check_branch
        %186 = sbr.rel (%p184) target = $region24
      $region23: #{transition_forward.1} parent=11 // pred_region
        _
      $region24: #{transition_forward.1} parent=11 // pred_fallthru
        _
      // Predicated region
      $region25: #{transition_forward.1} parent=11 // pred_check
        %p187 = pneg %p135
      $region26: #{transition_forward.1} parent=11 // pred_check_branch
        %189 = sbr.rel (%p187) target = $region28
      $region27: #{transition_forward.1} parent=11 // pred_region
        _
      $region28: #{transition_forward.1} parent=11 // pred_fallthru
        _
    $region12: #{transition_forward.1} parent=5 // pred_fallthru
      _
    %p190 = scmp.lt.s32.totalorder %s11, 2
    // Predicated region
    $region29: #{transition_forward.1} parent=5 // pred_check
      %p191 = pneg %p190
    $region30: #{transition_forward.1} parent=5 // pred_check_branch
      %193 = sbr.rel (%p191) target = $region32
    $region31: #{transition_forward.1} parent=5 // pred_region
      // Predicated region
      $region33: #{transition_forward.1} parent=31 // pred_check
        %p194 = pneg %p45
      $region34: #{transition_forward.1} parent=31 // pred_check_branch
        %196 = sbr.rel (%p194) target = $region36
      $region35: #{transition_forward.1} parent=31 // pred_region
        %s197 = smul.u32 2, %s19
        %p198 = scmp.lt.s32.totalorder %s18, 1
        %s199 = scalar_select %p198, %s18, 1
        %p200 = scmp.lt.s32.totalorder %s197, 1
        %s201 = scalar_select %p200, %s197, 1
        %s202 = smul.addr %s199, 4
        %s203 = sadd.s32 %s201, %s202
        %s204 = smul.addr %s203, 8
        %s205 = scalar_lea.vmem %s0, %s204
        %s206 = smul.u32 2, %s19
      $region36: #{transition_forward.1} parent=31 // pred_fallthru
        _
    $region32: #{transition_forward.1} parent=5 // pred_fallthru
      _
    %p207 = scmp.le.s32.totalorder 1, %s11
    %p208 = scmp.lt.s32.totalorder %s11, 3
    %p209 = pnand %p207, %p208
    %p210 = pneg %p209
    // Predicated region
    $region37: #{transition_forward.1} parent=5 // pred_check
      _
    $region38: #{transition_forward.1} parent=5 // pred_check_branch
      %212 = sbr.rel (%p209) target = $region40
    $region39: #{transition_forward.1} parent=5 // pred_region
      %s213 = ssub.s32 %s11, 1
      %s214 = smul.u32 2, %s21
      %p215 = scmp.lt.s32.totalorder %s20, 1
      %s216 = scalar_select %p215, %s20, 1
      %p217 = scmp.lt.s32.totalorder %s214, 1
      %s218 = scalar_select %p217, %s214, 1
      %s219 = smul.addr %s216, 4
      %s220 = sadd.s32 %s218, %s219
      %s221 = smul.addr %s220, 8
      %s222 = scalar_lea.vmem %s0, %s221
      %p223 = pneg %p51
      %p224 = pneg %p48
      %p225 = pneg %p72
      %p226 = pneg %p69
      %p227 = pneg %p93
      %p228 = pneg %p90
      %p229 = pneg %p114
      %p230 = pneg %p111
      %p231 = pneg %p135
      %p232 = pneg %p132
      %p233 = pneg %p163
      %p234 = pneg %p160
      %p235 = scmp.lt.s32.totalorder %s20, 1
      %s236 = scalar_select %p235, %s20, 1
      %p237 = scmp.lt.s32.totalorder %s21, 0
      %s238 = scalar_select %p237, %s21, 0
      %s239 = sadd.s32 %s238, %s236
      %s240 = smul.addr %s239, 8
      %s241 = scalar_lea.vmem %s5, %s240
      %s242 = smul.u32 2, %s21
      %p243 = scmp.lt.s32.totalorder %s20, 1
      %s244 = scalar_select %p243, %s20, 1
      %p245 = scmp.lt.s32.totalorder %s242, 1
      %s246 = scalar_select %p245, %s242, 1
      %s247 = smul.addr %s244, 4
      %s248 = sadd.s32 %s246, %s247
      %s249 = smul.addr %s248, 8
      %s250 = scalar_lea.vmem %s0, %s249
      %s251 = smul.u32 2, %s21
      %p252 = scmp.lt.s32.totalorder %s20, 1
      %s253 = scalar_select %p252, %s20, 1
      %p254 = scmp.lt.s32.totalorder %s21, 0
      %s255 = scalar_select %p254, %s21, 0
      %s256 = sadd.s32 %s255, %s253
      %s257 = smul.addr %s256, 8
      %s258 = scalar_lea.vmem %s5, %s257
      %v259 = vld [vmem:[%s250] sm:$0xff]
      %v260 = vld [vmem:[%s250 + $0x8] sm:$0xff]
      %v261 = vld [vmem:[%s250 + $0x10] sm:$0xff]
      %v262 = vld [vmem:[%s250 + $0x18] sm:$0xff]
      %v263 = vld [vmem:[%s1] sm:$0xff]
      %v264 = vld [vmem:[%s1 + $0x8] sm:$0xff]
      %266 = vset.pattern.permute.xlu0 0
      %267 = vperm.xlu0 %266, %v263
      %v268 = vpop.permute.xlu0 %267
      %271 = vset.pattern.permute.xlu0 0
      %272 = vperm.xlu0 %271, %v264
      %v273 = vpop.permute.xlu0 %272
      %v275 = vmul.f32 %v259, %v268
      %v276 = vmul.f32 %v260, %v268
      %v277 = vmul.f32 %v261, %v273
      %v278 = vmul.f32 %v262, %v273
      %v279 = vld [vmem:[%s2] sm:$0xff]
      %v280 = vld [vmem:[%s2 + $0x8] sm:$0xff]
      %282 = vset.pattern.permute.xlu0 0
      %283 = vperm.xlu0 %282, %v279
      %v284 = vpop.permute.xlu0 %283
      %287 = vset.pattern.permute.xlu0 0
      %288 = vperm.xlu0 %287, %v280
      %v289 = vpop.permute.xlu0 %288
      %v291 = vadd.f32 %v275, %v284
      %v292 = vadd.f32 %v276, %v284
      %v293 = vadd.f32 %v277, %v289
      %v294 = vadd.f32 %v278, %v289
      %v295 = vmin.f32 %v291, 20.0
      %v296 = vmin.f32 %v292, 20.0
      %v297 = vmin.f32 %v293, 20.0
      %v298 = vmin.f32 %v294, 20.0
      %v299 = vmul.f32 %v295, 1.442695
      %v300 = vpow.pop %v299
      %v301 = vmul.f32 %v296, 1.442695
      %v302 = vpow.pop %v301
      %v303 = vmul.f32 %v297, 1.442695
      %v304 = vpow.pop %v303
      %v305 = vmul.f32 %v298, 1.442695
      %v306 = vpow.pop %v305
      %v307 = vadd.f32 %v300, 2.0
      %v308 = vadd.f32 %v302, 2.0
      %v309 = vadd.f32 %v304, 2.0
      %v310 = vadd.f32 %v306, 2.0
      %v311 = vmul.f32 %v300, %v307
      %v312 = vmul.f32 %v302, %v308
      %v313 = vmul.f32 %v304, %v309
      %v314 = vmul.f32 %v306, %v310
      %v315 = vadd.f32 %v311, 2.0
      %v316 = vadd.f32 %v312, 2.0
      %v317 = vadd.f32 %v313, 2.0
      %v318 = vadd.f32 %v314, 2.0
      %v319 = vrcp.pop %v315
      %v320 = vmul.f32 %v311, %v319
      %v321 = vrcp.pop %v316
      %v322 = vmul.f32 %v312, %v321
      %v323 = vrcp.pop %v317
      %v324 = vmul.f32 %v313, %v323
      %v325 = vrcp.pop %v318
      %v326 = vmul.f32 %v314, %v325
      %v327 = vmul.f32 %v291, %v320
      %v328 = vmul.f32 %v292, %v322
      %v329 = vmul.f32 %v293, %v324
      %v330 = vmul.f32 %v294, %v326
      %vm331 = vcmp.gt.f32.partialorder %v291, 20.0
      %vm332 = vcmp.gt.f32.partialorder %v292, 20.0
      %vm333 = vcmp.gt.f32.partialorder %v293, 20.0
      %vm334 = vcmp.gt.f32.partialorder %v294, 20.0
      %v335 = vsel %vm331, %v291, %v327
      %v336 = vsel %vm332, %v292, %v328
      %v337 = vsel %vm333, %v293, %v329
      %v338 = vsel %vm334, %v294, %v330
      %v339 = vld [vmem:[%s3] sm:$0xff]
      %v340 = vld [vmem:[%s3 + $0x8] sm:$0xff]
      %v341 = vld [vmem:[%s3 + $0x10] sm:$0xff]
      %v342 = vld [vmem:[%s3 + $0x18] sm:$0xff]
      %v343 = vld [vmem:[%s3 + $0x20] sm:$0xff]
      %v344 = vld [vmem:[%s3 + $0x28] sm:$0xff]
      %v345 = vld [vmem:[%s3 + $0x30] sm:$0xff]
      %v346 = vld [vmem:[%s3 + $0x38] sm:$0xff]
      %v347 = vld [vmem:[%s3 + $0x40] sm:$0xff]
      %v348 = vld [vmem:[%s3 + $0x48] sm:$0xff]
      %v349 = vld [vmem:[%s3 + $0x50] sm:$0xff]
      %v350 = vld [vmem:[%s3 + $0x58] sm:$0xff]
      %v351 = vld [vmem:[%s3 + $0x60] sm:$0xff]
      %v352 = vld [vmem:[%s3 + $0x68] sm:$0xff]
      %v353 = vld [vmem:[%s3 + $0x70] sm:$0xff]
      %v354 = vld [vmem:[%s3 + $0x78] sm:$0xff]
      %v355 = vld [vmem:[%s3 + $0x80] sm:$0xff]
      %v356 = vld [vmem:[%s3 + $0x88] sm:$0xff]
      %v357 = vld [vmem:[%s3 + $0x90] sm:$0xff]
      %v358 = vld [vmem:[%s3 + $0x98] sm:$0xff]
      %v359 = vld [vmem:[%s3 + $0xa0] sm:$0xff]
      %v360 = vld [vmem:[%s3 + $0xa8] sm:$0xff]
      %v361 = vld [vmem:[%s3 + $0xb0] sm:$0xff]
      %v362 = vld [vmem:[%s3 + $0xb8] sm:$0xff]
      %v363 = vld [vmem:[%s3 + $0xc0] sm:$0xff]
      %v364 = vld [vmem:[%s3 + $0xc8] sm:$0xff]
      %v365 = vld [vmem:[%s3 + $0xd0] sm:$0xff]
      %v366 = vld [vmem:[%s3 + $0xd8] sm:$0xff]
      %v367 = vld [vmem:[%s3 + $0xe0] sm:$0xff]
      %v368 = vld [vmem:[%s3 + $0xe8] sm:$0xff]
      %v369 = vld [vmem:[%s3 + $0xf0] sm:$0xff]
      %v370 = vld [vmem:[%s3 + $0xf8] sm:$0xff]
      %371 = vmatprep.subr.mxu0 0.0
      %372 = vmatpush1.msra.mxu0 %v339
      %373 = vmatprep.subr.mxu0 0.0
      %374 = vmatpush1.msra.mxu0 %v340
      %375 = vmatprep.subr.mxu0 0.0
      %376 = vmatpush1.msra.mxu0 %v341
      %377 = vmatprep.subr.mxu0 0.0
      %378 = vmatpush1.msra.mxu0 %v342
      %379 = vmatprep.subr.mxu0 0.0
      %380 = vmatpush1.msra.mxu0 %v343
      %381 = vmatprep.subr.mxu0 0.0
      %382 = vmatpush1.msra.mxu0 %v344
      %383 = vmatprep.subr.mxu0 0.0
      %384 = vmatpush1.msra.mxu0 %v345
      %385 = vmatprep.subr.mxu0 0.0
      %386 = vmatpush1.msra.mxu0 %v346
      %387 = vmatprep.subr.mxu0 0.0
      %388 = vmatpush1.msra.mxu0 %v347
      %389 = vmatprep.subr.mxu0 0.0
      %390 = vmatpush1.msra.mxu0 %v348
      %391 = vmatprep.subr.mxu0 0.0
      %392 = vmatpush1.msra.mxu0 %v349
      %393 = vmatprep.subr.mxu0 0.0
      %394 = vmatpush1.msra.mxu0 %v350
      %395 = vmatprep.subr.mxu0 0.0
      %396 = vmatpush1.msra.mxu0 %v351
      %397 = vmatprep.subr.mxu0 0.0
      %398 = vmatpush1.msra.mxu0 %v352
      %399 = vmatprep.subr.mxu0 0.0
      %400 = vmatpush1.msra.mxu0 %v353
      %401 = vmatprep.subr.mxu0 0.0
      %402 = vmatpush1.msra.mxu0 %v354
      %403 = vmatprep.subr.mxu0 0.0
      %404 = vmatpush1.msra.mxu0 %v355
      %405 = vmatprep.subr.mxu0 0.0
      %406 = vmatpush1.msra.mxu0 %v356
      %407 = vmatprep.subr.mxu0 0.0
      %408 = vmatpush1.msra.mxu0 %v357
      %409 = vmatprep.subr.mxu0 0.0
      %410 = vmatpush1.msra.mxu0 %v358
      %411 = vmatprep.subr.mxu0 0.0
      %412 = vmatpush1.msra.mxu0 %v359
      %413 = vmatprep.subr.mxu0 0.0
      %414 = vmatpush1.msra.mxu0 %v360
      %415 = vmatprep.subr.mxu0 0.0
      %416 = vmatpush1.msra.mxu0 %v361
      %417 = vmatprep.subr.mxu0 0.0
      %418 = vmatpush1.msra.mxu0 %v362
      %419 = vmatprep.subr.mxu0 0.0
      %420 = vmatpush1.msra.mxu0 %v363
      %421 = vmatprep.subr.mxu0 0.0
      %422 = vmatpush1.msra.mxu0 %v364
      %423 = vmatprep.subr.mxu0 0.0
      %424 = vmatpush1.msra.mxu0 %v365
      %425 = vmatprep.subr.mxu0 0.0
      %426 = vmatpush1.msra.mxu0 %v366
      %427 = vmatprep.subr.mxu0 0.0
      %428 = vmatpush1.msra.mxu0 %v367
      %429 = vmatprep.subr.mxu0 0.0
      %430 = vmatpush1.msra.mxu0 %v368
      %431 = vmatprep.subr.mxu0 0.0
      %432 = vmatpush1.msra.mxu0 %v369
      %433 = vmatprep.subr.mxu0 0.0
      %434 = vmatpush1.msra.mxu0 %v370
      %435 = vmatprep.mubr.f32.mxu0 %v336
      %436 = vmatmul.mubr.f32.gmra.mrb[0].mxu0 %v335
      %v437 = vpop.f32.mrb[0].mxu0
      %v438 = vadd.f32 0.0, %v437
      %v439 = vpop.f32.mrb[0].mxu0
      %440 = vmatprep.mubr.f32.mxu0 %v338
      %441 = vmatmul.mubr.f32.gmra.mrb[0].mxu0 %v337
      %v442 = vpop.f32.mrb[0].mxu0
      %v443 = vadd.f32 0.0, %v442
      %v444 = vpop.f32.mrb[0].mxu0
      %445 = vdwg.mxu0
      %v446 = vld [vmem:[%s4] sm:$0xff]
      %vm447 = vcmask 130048
      %v449 = vsel %vm447, %v446, 0
      %451 = vmatprep.subr.mxu0 0.0
      %452 = vmatpush1.msra.mxu0 %v438
      %453 = vmatprep.subr.mxu0 0.0
      %454 = vmatpush1.msra.mxu0 %v443
      %455 = vmatprep.subr.mxu0 0.0
      %456 = vmatpush1.msra.mxu0 0.0
      %457 = vmatprep.subr.mxu0 0.0
      %458 = vmatpush1.msra.mxu0 0.0
      %459 = vmatprep.subr.mxu0 0.0
      %460 = vmatpush1.msra.mxu0 0.0
      %461 = vmatprep.subr.mxu0 0.0
      %462 = vmatpush1.msra.mxu0 0.0
      %463 = vmatprep.subr.mxu0 0.0
      %464 = vmatpush1.msra.mxu0 0.0
      %465 = vmatprep.subr.mxu0 0.0
      %466 = vmatpush1.msra.mxu0 0.0
      %467 = vmatprep.subr.mxu0 0.0
      %468 = vmatpush1.msra.mxu0 0.0
      %469 = vmatprep.subr.mxu0 0.0
      %470 = vmatpush1.msra.mxu0 0.0
      %471 = vmatprep.subr.mxu0 0.0
      %472 = vmatpush1.msra.mxu0 0.0
      %473 = vmatprep.subr.mxu0 0.0
      %474 = vmatpush1.msra.mxu0 0.0
      %475 = vmatprep.subr.mxu0 0.0
      %476 = vmatpush1.msra.mxu0 0.0
      %477 = vmatprep.subr.mxu0 0.0
      %478 = vmatpush1.msra.mxu0 0.0
      %479 = vmatprep.subr.mxu0 0.0
      %480 = vmatpush1.msra.mxu0 0.0
      %481 = vmatprep.subr.mxu0 0.0
      %482 = vmatpush1.msra.mxu0 0.0
      %483 = vmatprep.subr.mxu0 0.0
      %484 = vmatpush1.msra.mxu0 0.0
      %485 = vmatprep.subr.mxu0 0.0
      %486 = vmatpush1.msra.mxu0 0.0
      %487 = vmatprep.subr.mxu0 0.0
      %488 = vmatpush1.msra.mxu0 0.0
      %489 = vmatprep.subr.mxu0 0.0
      %490 = vmatpush1.msra.mxu0 0.0
      %491 = vmatprep.subr.mxu0 0.0
      %492 = vmatpush1.msra.mxu0 0.0
      %493 = vmatprep.subr.mxu0 0.0
      %494 = vmatpush1.msra.mxu0 0.0
      %495 = vmatprep.subr.mxu0 0.0
      %496 = vmatpush1.msra.mxu0 0.0
      %497 = vmatprep.subr.mxu0 0.0
      %498 = vmatpush1.msra.mxu0 0.0
      %499 = vmatprep.subr.mxu0 0.0
      %500 = vmatpush1.msra.mxu0 0.0
      %501 = vmatprep.subr.mxu0 0.0
      %502 = vmatpush1.msra.mxu0 0.0
      %503 = vmatprep.subr.mxu0 0.0
      %504 = vmatpush1.msra.mxu0 0.0
      %505 = vmatprep.subr.mxu0 0.0
      %506 = vmatpush1.msra.mxu0 0.0
      %507 = vmatprep.subr.mxu0 0.0
      %508 = vmatpush1.msra.mxu0 0.0
      %509 = vmatprep.subr.mxu0 0.0
      %510 = vmatpush1.msra.mxu0 0.0
      %511 = vmatprep.subr.mxu0 0.0
      %512 = vmatpush1.msra.mxu0 0.0
      %513 = vmatprep.subr.mxu0 0.0
      %514 = vmatpush1.msra.mxu0 0.0
      %515 = vmatprep.mubr.f32.mxu0 0.0
      %516 = vmatmul.mubr.f32.gmra.mrb[0].mxu0 %v449
      %v517 = vpop.f32.mrb[0].mxu0
      %v518 = vadd.f32 0.0, %v517
      %v519 = vpop.f32.mrb[0].mxu0
      %520 = vdwg.mxu0
      %vm521 = vcmask 523264
      %522 = vst.msk [vmem:[%s258] sm:$0xff] %vm521, %v518
      %p523 = scmp.lt.s32.totalorder %s20, 1
      %s524 = scalar_select %p523, %s20, 1
      %p525 = scmp.lt.s32.totalorder %s21, 0
      %s526 = scalar_select %p525, %s21, 0
      %s527 = sadd.s32 %s526, %s524
      %s528 = smul.addr %s527, 8
      %s529 = scalar_lea.vmem %s5, %s528
      // Predicated region
      $region41: #{transition_forward.1} parent=39 // pred_check
        %p530 = pneg %p160
      $region42: #{transition_forward.1} parent=39 // pred_check_branch
        %532 = sbr.rel (%p530) target = $region44
      $region43: #{transition_forward.1} parent=39 // pred_region
        _
      $region44: #{transition_forward.1} parent=39 // pred_fallthru
        _
    $region40: #{transition_forward.1} parent=5 // pred_fallthru
      _
    %p533 = scmp.le.s32.totalorder 2, %s11
    // Predicated region
    $region45: #{transition_forward.1} parent=5 // pred_check
      %p534 = pneg %p533
    $region46: #{transition_forward.1} parent=5 // pred_check_branch
      %536 = sbr.rel (%p534) target = $region48
    $region47: #{transition_forward.1} parent=5 // pred_region
      %s537 = ssub.s32 %s11, 2
      // Predicated region
      $region49: #{transition_forward.1} parent=47 // pred_check
        %p538 = pneg %p166
      $region50: #{transition_forward.1} parent=47 // pred_check_branch
        %540 = sbr.rel (%p538) target = $region52
      $region51: #{transition_forward.1} parent=47 // pred_region
        %p541 = scmp.lt.s32.totalorder %s22, 1
        %s542 = scalar_select %p541, %s22, 1
        %p543 = scmp.lt.s32.totalorder %s23, 0
        %s544 = scalar_select %p543, %s23, 0
        %s545 = sadd.s32 %s544, %s542
        %s546 = smul.addr %s545, 8
        %s547 = scalar_lea.vmem %s5, %s546
      $region52: #{transition_forward.1} parent=47 // pred_fallthru
        _
    $region48: #{transition_forward.1} parent=5 // pred_fallthru
      _
  $region6: #{transition_forward.1} parent=0 // loop_footer
    %s15 = sadd.s32 1, %s11
  $region7: #{transition_forward.1} parent=0 // loop_footer_branch
    %10 = sbr.rel target = $region3
  $region8: #{transition_forward.1} parent=0 // loop_exit
    _

</llo_original>
